<compile_context>
chip_gen: v6e
topology: v6e:2x2x1
jax: 0.10.0
libtpu: 0.0.40
codegen_flags: <defaults>
</compile_context>

<pallas_src>
import numpy as np
import jax
import jax.numpy as jnp
from jax.experimental import pallas as pl
from jax.experimental.pallas import tpu as pltpu

# ---------------------------------------------------------------------------
# Problem constants + merged-row layout (both batches share one row axis).
# ---------------------------------------------------------------------------
B = 2          # batch
C_IN = 22      # input channels
L_IN = 135     # input length

# conv/pool arithmetic (must match the PyTorch module)
N1 = (L_IN - 5) // 2 + 1      # 66 conv1(k=5,s=2) outputs per batch
P1 = N1 // 3                  # 22 after MaxPool1d(3)
N2 = P1 - 2                   # 20 conv2(k=3) outputs
P2 = N2 // 2                  # 10 after MaxPool1d(2)
N3 = P2 - 2                   # 8  conv3(k=3) outputs
P3 = N3 // 2                  # 4  after MaxPool1d(2)
assert P3 * 16 == 64          # f1 fan-in must match flattened conv output

# Per-batch row strides of the merged layout.  Batch b's data always starts at
# row b*S_l; rows in [valid extent, S_l) are garbage that is provably never
# read by a valid output (asserts below tie this to the conv/pool arithmetic).
S3 = 6                        # stride after pool3 (>= P3)
S2 = 2 * S3                   # 12 stride after pool2 / conv3 rows (>= P2)
S1 = 2 * S2                   # 24 stride after pool1 / conv2 rows (>= P1)
S0 = 3 * S1                   # 72 stride of conv1-output / p1 rows (>= N1)
assert S0 >= N1 and S1 >= P1 and S2 >= P2 and S3 >= P3
assert S0 % 3 == 0 and S1 % 2 == 0 and S2 % 2 == 0     # pool groups align with batch starts
assert 3 * P1 <= N1 and 2 * P2 <= N2 and 2 * P3 <= N3  # valid pools read only valid rows

T0 = B * S0                   # 144 p1 / conv1 rows the kernel computes
M2 = (B - 1) * S1 + N2        # 44  conv2 rows computed
M3 = (B - 1) * S2 + N3        # 20  conv3 rows computed
M4 = (B - 1) * S3 + 1         # 7   f1 rows computed (valid rows: 0 and S3)
P1R = T0 // 3                 # 48  pool1 rows materialized
P2R = M2 // 2                 # 22  pool2 rows
P3R = M3 // 2                 # 10  pool3 rows
assert T0 % 3 == 0 and M2 % 2 == 0 and M3 % 2 == 0
assert M2 + 2 <= P1R and M3 + 2 <= P2R and M4 + 3 <= P3R   # every read is in range

K1 = 128                      # conv1 packed K: 110 taps + 1 bias lane + zero pad
assert 5 * C_IN + 1 <= K1


# ---------------------------------------------------------------------------
# Kernel
# ---------------------------------------------------------------------------
def net1_kernel(p1_ref, w1_ref, w2_ref, w3_ref, wf1_ref, wf2_ref, out_ref,
                s1_ref, s2_ref, s3_ref):
    f32 = jnp.float32
    bf16 = jnp.bfloat16

    # --- c1: Conv1d(22->32, k=5, s=2) as ONE matmul over both batches.
    # Bias + constant-one channel are folded into w1 (patch lane 110 is the
    # bias lane built by the wrapper; output column 32 is always 1).
    s1_ref[...] = jnp.dot(p1_ref[...], w1_ref[...],
                          preferred_element_type=f32)                    # (144, 33)
    # MaxPool1d(3) + ReLU via strided sublane re-reads (no (M,3,C) relayout);
    # ReLU commutes with max, so it is applied once on the pooled rows.
    h = jnp.maximum(
        jnp.maximum(s1_ref[pl.ds(0, P1R, stride=3), :],
                    s1_ref[pl.ds(1, P1R, stride=3), :]),
        jnp.maximum(s1_ref[pl.ds(2, P1R, stride=3), :], 0.0))            # (48, 33)

    # --- c2: Conv1d(32->16, k=3): im2col by lane-concat of shifted row windows.
    p2 = jnp.concatenate([h[0:M2], h[1:M2 + 1], h[2:M2 + 2]], axis=-1)   # (44, 99)
    s2_ref[...] = jnp.dot(p2.astype(bf16), w2_ref[...],
                          preferred_element_type=f32)                    # (44, 17)
    h = jnp.maximum(jnp.maximum(s2_ref[pl.ds(0, P2R, stride=2), :],
                                s2_ref[pl.ds(1, P2R, stride=2), :]),
                    0.0)                                                 # (22, 17)

    # --- c3: Conv1d(16->16, k=3)
    p3 = jnp.concatenate([h[0:M3], h[1:M3 + 1], h[2:M3 + 2]], axis=-1)   # (20, 51)
    s3_ref[...] = jnp.dot(p3.astype(bf16), w3_ref[...],
                          preferred_element_type=f32)                    # (20, 17)
    h = jnp.maximum(jnp.maximum(s3_ref[pl.ds(0, P3R, stride=2), :],
                                s3_ref[pl.ds(1, P3R, stride=2), :]),
                    0.0)                                                 # (10, 17)

    # --- f1: Linear(64->32) as one K=68 contraction (4 taps x 17 lanes, bias folded).
    pf = jnp.concatenate([h[0:M4], h[1:M4 + 1], h[2:M4 + 2], h[3:M4 + 3]],
                         axis=-1)                                        # (7, 68)
    z = jnp.maximum(jnp.dot(pf.astype(bf16), wf1_ref[...],
                            preferred_element_type=f32), 0.0)            # (7, 33)
    # --- f2: Linear(32->3); bias folded via z's constant-one lane (column 32).
    y = jnp.dot(z.astype(bf16), wf2_ref[...],
                preferred_element_type=f32)                              # (7, 3)

    # Batch 0 lives at merged row 0, batch 1 at row S3; gather + one store.
    out_ref[...] = jnp.concatenate([y[0:1, :], y[S3:S3 + 1, :]], axis=0)


# ---------------------------------------------------------------------------
# One-time weight re-layout (hoisted out of the hot path)
# ---------------------------------------------------------------------------
def _pack_conv(w, b):
    """Pack a Conv1d weight (Cout, Cin, K) + bias into an im2col matmul weight.

    Returns (K*(Cin+1), Cout+1) float32.  The incoming patch is tap-major with,
    per tap, [Cin real channels | 1 constant-one channel].  The bias rides on
    the tap-0 ones lane; output column Cout regenerates the constant-one
    channel for the next layer.
    """
    cout, cin, k = w.shape
    blocks = []
    for t in range(k):
        blk = jnp.zeros((cin + 1, cout + 1), jnp.float32)
        blk = blk.at[:cin, :cout].set(w[:, :, t].T)
        if t == 0:
            blk = blk.at[cin, :cout].set(b)
            blk = blk.at[cin, cout].set(1.0)
        blocks.append(blk)
    return jnp.concatenate(blocks, axis=0)


def prepare_params(params):
    """Re-layout all weights once; kernel takes NO bias arguments (all folded)."""
    (w1, b1, w2, b2, w3, b3, wf1, bf1, wf2, bf2) = params
    bf16 = jnp.bfloat16

    # conv1: (32, 22, 5) -> (128, 33); rows t*22+c (time-major taps), row 110 =
    # bias / ones-channel generator, rows 111..127 zero pad.
    w1_t = jnp.transpose(w1, (2, 1, 0)).reshape(5 * C_IN, 32)
    w1p = jnp.zeros((K1, 33), jnp.float32)
    w1p = w1p.at[:5 * C_IN, :32].set(w1_t)
    w1p = w1p.at[5 * C_IN, :32].set(b1)
    w1p = w1p.at[5 * C_IN, 32].set(1.0)

    w2p = _pack_conv(w2, b2)                                    # (99, 17)
    w3p = _pack_conv(w3, b3)                                    # (51, 17)

    # f1: torch flattens (16, 4) channel-major (c*4 + t); kernel patch is
    # tap-major with 17 lanes per tap (16 real + ones).
    wf1_t = jnp.transpose(wf1.reshape(32, 16, 4), (2, 1, 0))    # [t, c, j]
    blocks = []
    for t in range(4):
        blk = jnp.zeros((17, 33), jnp.float32)
        blk = blk.at[:16, :32].set(wf1_t[t])
        if t == 0:
            blk = blk.at[16, :32].set(bf1)
            blk = blk.at[16, 32].set(1.0)
        blocks.append(blk)
    wf1p = jnp.concatenate(blocks, axis=0)                      # (68, 33)

    # f2: (3, 32) -> (33, 3) with the bias on the ones lane.
    wf2p = jnp.zeros((33, 3), jnp.float32)
    wf2p = wf2p.at[:32, :].set(wf2.T)
    wf2p = wf2p.at[32, :].set(bf2)

    return (w1p.astype(bf16), w2p.astype(bf16), w3p.astype(bf16),
            wf1p.astype(bf16), wf2p.astype(bf16))


# ---------------------------------------------------------------------------
# Forward wrapper
# ---------------------------------------------------------------------------
@jax.jit
def net1_forward(x, prepped):
    """x: (B, 22, 135) float32 in PyTorch NCL layout; prepped = prepare_params(...)."""
    # Fused input glue: emit the layer-1 im2col patch for BOTH batches directly
    # in bf16, bias lane appended, lanes zero-padded to 128, merged-row layout
    # (batch b at row offset b*S0; pad rows are all-zero -> garbage only).
    xt = jnp.transpose(x, (0, 2, 1)).astype(jnp.bfloat16)           # (B, 135, 22)
    taps = [xt[:, t:t + 2 * N1 - 1:2, :] for t in range(5)]         # 5 x (B, 66, 22)
    ones = jnp.ones((B, N1, 1), jnp.bfloat16)
    p1 = jnp.concatenate(taps + [ones], axis=-1)                    # (B, 66, 111)
    p1 = jnp.pad(p1, ((0, 0), (0, S0 - N1), (0, K1 - (5 * C_IN + 1))))
    p1 = p1.reshape(T0, K1)                                         # (144, 128) bf16

    vmem = pl.BlockSpec(memory_space=pltpu.MemorySpace.VMEM)
    return pl.pallas_call(
        net1_kernel,
        out_shape=jax.ShapeDtypeStruct((B, 3), jnp.float32),
        in_specs=[vmem] * (1 + len(prepped)),
        out_specs=vmem,
        scratch_shapes=[
            pltpu.VMEM((T0, 33), jnp.float32),   # conv1 pre-pool
            pltpu.VMEM((M2, 17), jnp.float32),   # conv2 pre-pool
            pltpu.VMEM((M3, 17), jnp.float32),   # conv3 pre-pool
        ],
    )(p1, *prepped)


# ---------------------------------------------------------------------------
# Init + pure-JAX reference (for validation)
# ---------------------------------------------------------------------------
def init_params(key):
    """Deterministic PyTorch-style uniform(-1/sqrt(fan_in), 1/sqrt(fan_in)) init."""
    def uni(k, shape, fan_in):
        bound = 1.0 / np.sqrt(fan_in)
        return jax.random.uniform(k, shape, jnp.float32, -bound, bound)
    ks = jax.random.split(key, 10)
    w1 = uni(ks[0], (32, 22, 5), 22 * 5); b1 = uni(ks[1], (32,), 22 * 5)
    w2 = uni(ks[2], (16, 32, 3), 32 * 3); b2 = uni(ks[3], (16,), 32 * 3)
    w3 = uni(ks[4], (16, 16, 3), 16 * 3); b3 = uni(ks[5], (16,), 16 * 3)
    wf1 = uni(ks[6], (32, 64), 64);       bf1 = uni(ks[7], (32,), 64)
    wf2 = uni(ks[8], (3, 32), 32);        bf2 = uni(ks[9], (3,), 32)
    return (w1, b1, w2, b2, w3, b3, wf1, bf1, wf2, bf2)


def net1_reference(x, params):
    """Pure-JAX reference mirroring the PyTorch forward."""
    (w1, b1, w2, b2, w3, b3, wf1, bf1, wf2, bf2) = params

    def conv1d(h, w, b, stride):
        y = jax.lax.conv_general_dilated(
            h, w, window_strides=(stride,), padding='VALID',
            dimension_numbers=('NCH', 'OIH', 'NCH'))
        return y + b[None, :, None]

    def maxpool1d(h, k):
        L = h.shape[-1]
        Lp = (L // k) * k
        return jnp.max(h[:, :, :Lp].reshape(h.shape[0], h.shape[1], L // k, k),
                       axis=-1)

    h = maxpool1d(jnp.maximum(conv1d(x, w1, b1, 2), 0.0), 3)
    h = maxpool1d(jnp.maximum(conv1d(h, w2, b2, 1), 0.0), 2)
    h = maxpool1d(jnp.maximum(conv1d(h, w3, b3, 1), 0.0), 2)
    h = h.reshape(h.shape[0], -1)
    h = jnp.maximum(h @ wf1.T + bf1, 0.0)
    return h @ wf2.T + bf2


if __name__ == "__main__":
    key = jax.random.PRNGKey(0)
    kx, kp = jax.random.split(key)
    x = jax.random.normal(kx, (B, C_IN, L_IN), jnp.float32)
    params = init_params(kp)
    prepped = prepare_params(params)          # one-time, out of the hot path

    out = jax.block_until_ready(net1_forward(x, prepped))
    ref = jax.block_until_ready(net1_reference(x, params))

    assert out.shape == (B, 3), out.shape
    if not np.allclose(np.asarray(out), np.asarray(ref), atol=5e-2, rtol=5e-2):
        diff = float(np.max(np.abs(np.asarray(out) - np.asarray(ref))))
        raise AssertionError(f"kernel/reference mismatch, max abs diff = {diff}")
    print("KERNEL_OK")
</pallas_src>

<mosaic_0001>
module attributes {stable_mosaic.version = 11 : i64} {
  func.func @net1_kernel(%arg0: memref<144x128xbf16, #tpu.memory_space<vmem>>, %arg1: memref<128x33xbf16, #tpu.memory_space<vmem>>, %arg2: memref<99x17xbf16, #tpu.memory_space<vmem>>, %arg3: memref<51x17xbf16, #tpu.memory_space<vmem>>, %arg4: memref<68x33xbf16, #tpu.memory_space<vmem>>, %arg5: memref<33x3xbf16, #tpu.memory_space<vmem>>, %arg6: memref<2x3xf32, #tpu.memory_space<vmem>>, %arg7: memref<144x33xf32, #tpu.memory_space<vmem>>, %arg8: memref<44x17xf32, #tpu.memory_space<vmem>>, %arg9: memref<20x17xf32, #tpu.memory_space<vmem>>) attributes {dimension_semantics = [], scalar_prefetch = 0 : i64, scratch_operands = 3 : i64, tpu.core_type = #tpu.core_type<tc>} {
    %c0 = arith.constant 0 : index
    %c0_0 = arith.constant 0 : index
    %0 = vector.load %arg0[%c0, %c0_0] : memref<144x128xbf16, #tpu.memory_space<vmem>>, vector<144x128xbf16>
    %c0_1 = arith.constant 0 : index
    %c0_2 = arith.constant 0 : index
    %1 = vector.load %arg1[%c0_1, %c0_2] : memref<128x33xbf16, #tpu.memory_space<vmem>>, vector<128x33xbf16>
    %cst = arith.constant dense<0.000000e+00> : vector<144x33xf32>
    %2 = tpu.matmul %0, %1, %cst {dimension_numbers = #tpu.dot_dimension_numbers<[1], [0], [0], [1], [0, 0, 1, 1], [], []>} : vector<144x128xbf16>, vector<128x33xbf16>, vector<144x33xf32> -> vector<144x33xf32>
    %c0_3 = arith.constant 0 : index
    %c0_4 = arith.constant 0 : index
    %3 = vector.load %arg7[%c0_3, %c0_4] : memref<144x33xf32, #tpu.memory_space<vmem>>, vector<144x33xf32>
    tpu.vector_store %arg7[%c0_3, %c0_4], %2 {strides = array<i32>} : memref<144x33xf32, #tpu.memory_space<vmem>>, vector<144x33xf32>,
    %c0_5 = arith.constant 0 : index
    %c0_6 = arith.constant 0 : index
    %4 = tpu.strided_load %arg7[%c0_5, %c0_6] {strides = array<i32: 3, 1>} : memref<144x33xf32, #tpu.memory_space<vmem>>, vector<48x33xf32>
    %c1 = arith.constant 1 : index
    %c0_7 = arith.constant 0 : index
    %5 = tpu.strided_load %arg7[%c1, %c0_7] {strides = array<i32: 3, 1>} : memref<144x33xf32, #tpu.memory_space<vmem>>, vector<48x33xf32>
    %6 = arith.maximumf %4, %5 : vector<48x33xf32>
    %c2 = arith.constant 2 : index
    %c0_8 = arith.constant 0 : index
    %7 = tpu.strided_load %arg7[%c2, %c0_8] {strides = array<i32: 3, 1>} : memref<144x33xf32, #tpu.memory_space<vmem>>, vector<48x33xf32>
    %cst_9 = arith.constant 0.000000e+00 : f32
    %8 = vector.broadcast %cst_9 : f32 to vector<48x33xf32>
    %9 = arith.maximumf %7, %8 : vector<48x33xf32>
    %10 = arith.maximumf %6, %9 : vector<48x33xf32>
    %11 = vector.extract_strided_slice %10 {offsets = [0, 0], sizes = [44, 33], strides = [1, 1]} : vector<48x33xf32> to vector<44x33xf32>
    %12 = vector.extract_strided_slice %10 {offsets = [1, 0], sizes = [44, 33], strides = [1, 1]} : vector<48x33xf32> to vector<44x33xf32>
    %13 = vector.extract_strided_slice %10 {offsets = [2, 0], sizes = [44, 33], strides = [1, 1]} : vector<48x33xf32> to vector<44x33xf32>
    %14 = tpu.concatenate %11, %12, %13 in 1 : vector<44x33xf32>, vector<44x33xf32>, vector<44x33xf32> -> vector<44x99xf32>
    %15 = arith.truncf %14 : vector<44x99xf32> to vector<44x99xbf16>
    %c0_10 = arith.constant 0 : index
    %c0_11 = arith.constant 0 : index
    %16 = vector.load %arg2[%c0_10, %c0_11] : memref<99x17xbf16, #tpu.memory_space<vmem>>, vector<99x17xbf16>
    %cst_12 = arith.constant dense<0.000000e+00> : vector<44x17xf32>
    %17 = tpu.matmul %15, %16, %cst_12 {dimension_numbers = #tpu.dot_dimension_numbers<[1], [0], [0], [1], [0, 0, 1, 1], [], []>} : vector<44x99xbf16>, vector<99x17xbf16>, vector<44x17xf32> -> vector<44x17xf32>
    %c0_13 = arith.constant 0 : index
    %c0_14 = arith.constant 0 : index
    %18 = vector.load %arg8[%c0_13, %c0_14] : memref<44x17xf32, #tpu.memory_space<vmem>>, vector<44x17xf32>
    tpu.vector_store %arg8[%c0_13, %c0_14], %17 {strides = array<i32>} : memref<44x17xf32, #tpu.memory_space<vmem>>, vector<44x17xf32>,
    %c0_15 = arith.constant 0 : index
    %c0_16 = arith.constant 0 : index
    %19 = tpu.strided_load %arg8[%c0_15, %c0_16] {strides = array<i32: 2, 1>} : memref<44x17xf32, #tpu.memory_space<vmem>>, vector<22x17xf32>
    %c1_17 = arith.constant 1 : index
    %c0_18 = arith.constant 0 : index
    %20 = tpu.strided_load %arg8[%c1_17, %c0_18] {strides = array<i32: 2, 1>} : memref<44x17xf32, #tpu.memory_space<vmem>>, vector<22x17xf32>
    %21 = arith.maximumf %19, %20 : vector<22x17xf32>
    %cst_19 = arith.constant 0.000000e+00 : f32
    %22 = vector.broadcast %cst_19 : f32 to vector<22x17xf32>
    %23 = arith.maximumf %21, %22 : vector<22x17xf32>
    %24 = vector.extract_strided_slice %23 {offsets = [0, 0], sizes = [20, 17], strides = [1, 1]} : vector<22x17xf32> to vector<20x17xf32>
    %25 = vector.extract_strided_slice %23 {offsets = [1, 0], sizes = [20, 17], strides = [1, 1]} : vector<22x17xf32> to vector<20x17xf32>
    %26 = vector.extract_strided_slice %23 {offsets = [2, 0], sizes = [20, 17], strides = [1, 1]} : vector<22x17xf32> to vector<20x17xf32>
    %27 = tpu.concatenate %24, %25, %26 in 1 : vector<20x17xf32>, vector<20x17xf32>, vector<20x17xf32> -> vector<20x51xf32>
    %28 = arith.truncf %27 : vector<20x51xf32> to vector<20x51xbf16>
    %c0_20 = arith.constant 0 : index
    %c0_21 = arith.constant 0 : index
    %29 = vector.load %arg3[%c0_20, %c0_21] : memref<51x17xbf16, #tpu.memory_space<vmem>>, vector<51x17xbf16>
    %cst_22 = arith.constant dense<0.000000e+00> : vector<20x17xf32>
    %30 = tpu.matmul %28, %29, %cst_22 {dimension_numbers = #tpu.dot_dimension_numbers<[1], [0], [0], [1], [0, 0, 1, 1], [], []>} : vector<20x51xbf16>, vector<51x17xbf16>, vector<20x17xf32> -> vector<20x17xf32>
    %c0_23 = arith.constant 0 : index
    %c0_24 = arith.constant 0 : index
    %31 = vector.load %arg9[%c0_23, %c0_24] : memref<20x17xf32, #tpu.memory_space<vmem>>, vector<20x17xf32>
    tpu.vector_store %arg9[%c0_23, %c0_24], %30 {strides = array<i32>} : memref<20x17xf32, #tpu.memory_space<vmem>>, vector<20x17xf32>,
    %c0_25 = arith.constant 0 : index
    %c0_26 = arith.constant 0 : index
    %32 = tpu.strided_load %arg9[%c0_25, %c0_26] {strides = array<i32: 2, 1>} : memref<20x17xf32, #tpu.memory_space<vmem>>, vector<10x17xf32>
    %c1_27 = arith.constant 1 : index
    %c0_28 = arith.constant 0 : index
    %33 = tpu.strided_load %arg9[%c1_27, %c0_28] {strides = array<i32: 2, 1>} : memref<20x17xf32, #tpu.memory_space<vmem>>, vector<10x17xf32>
    %34 = arith.maximumf %32, %33 : vector<10x17xf32>
    %cst_29 = arith.constant 0.000000e+00 : f32
    %35 = vector.broadcast %cst_29 : f32 to vector<10x17xf32>
    %36 = arith.maximumf %34, %35 : vector<10x17xf32>
    %37 = vector.extract_strided_slice %36 {offsets = [0, 0], sizes = [7, 17], strides = [1, 1]} : vector<10x17xf32> to vector<7x17xf32>
    %38 = vector.extract_strided_slice %36 {offsets = [1, 0], sizes = [7, 17], strides = [1, 1]} : vector<10x17xf32> to vector<7x17xf32>
    %39 = vector.extract_strided_slice %36 {offsets = [2, 0], sizes = [7, 17], strides = [1, 1]} : vector<10x17xf32> to vector<7x17xf32>
    %40 = vector.extract_strided_slice %36 {offsets = [3, 0], sizes = [7, 17], strides = [1, 1]} : vector<10x17xf32> to vector<7x17xf32>
    %41 = tpu.concatenate %37, %38, %39, %40 in 1 : vector<7x17xf32>, vector<7x17xf32>, vector<7x17xf32>, vector<7x17xf32> -> vector<7x68xf32>
    %42 = arith.truncf %41 : vector<7x68xf32> to vector<7x68xbf16>
    %c0_30 = arith.constant 0 : index
    %c0_31 = arith.constant 0 : index
    %43 = vector.load %arg4[%c0_30, %c0_31] : memref<68x33xbf16, #tpu.memory_space<vmem>>, vector<68x33xbf16>
    %cst_32 = arith.constant dense<0.000000e+00> : vector<7x33xf32>
    %44 = tpu.matmul %42, %43, %cst_32 {dimension_numbers = #tpu.dot_dimension_numbers<[1], [0], [0], [1], [0, 0, 1, 1], [], []>} : vector<7x68xbf16>, vector<68x33xbf16>, vector<7x33xf32> -> vector<7x33xf32>
    %cst_33 = arith.constant 0.000000e+00 : f32
    %45 = vector.broadcast %cst_33 : f32 to vector<7x33xf32>
    %46 = arith.maximumf %44, %45 : vector<7x33xf32>
    %47 = arith.truncf %46 : vector<7x33xf32> to vector<7x33xbf16>
    %c0_34 = arith.constant 0 : index
    %c0_35 = arith.constant 0 : index
    %48 = vector.load %arg5[%c0_34, %c0_35] : memref<33x3xbf16, #tpu.memory_space<vmem>>, vector<33x3xbf16>
    %cst_36 = arith.constant dense<0.000000e+00> : vector<7x3xf32>
    %49 = tpu.matmul %47, %48, %cst_36 {dimension_numbers = #tpu.dot_dimension_numbers<[1], [0], [0], [1], [0, 0, 1, 1], [], []>} : vector<7x33xbf16>, vector<33x3xbf16>, vector<7x3xf32> -> vector<7x3xf32>
    %50 = vector.extract_strided_slice %49 {offsets = [0, 0], sizes = [1, 3], strides = [1, 1]} : vector<7x3xf32> to vector<1x3xf32>
    %51 = vector.extract_strided_slice %49 {offsets = [6, 0], sizes = [1, 3], strides = [1, 1]} : vector<7x3xf32> to vector<1x3xf32>
    %52 = tpu.concatenate %50, %51 in 0 : vector<1x3xf32>, vector<1x3xf32> -> vector<2x3xf32>
    %c0_37 = arith.constant 0 : index
    %c0_38 = arith.constant 0 : index
    %53 = vector.load %arg6[%c0_37, %c0_38] : memref<2x3xf32, #tpu.memory_space<vmem>>, vector<2x3xf32>
    tpu.vector_store %arg6[%c0_37, %c0_38], %52 {strides = array<i32>} : memref<2x3xf32, #tpu.memory_space<vmem>>, vector<2x3xf32>,
    return
  }
}

</mosaic_0001>

<llo_original>
// kernel: net1_forward.1
$region0: #{net1_forward.1}
  #allocation0 [shape = 'u32[]', space=smem, size = 0x4, offset = 0x4, fixed_abs, tag = 'smem constant byte address 0x4 - core index']
  #allocation1 [shape = 'u32[144,128]{1,0:T(1,128)}', space=vmem, size = 0x12000, scoped, tag = 'internal scratch']
  #allocation2 [shape = 'f32[144,33]{1,0:T(8,128)}', space=vmem, size = 0x12000, scoped, tag = 'scratch operand']
  #allocation3 [shape = 'f32[44,17]{1,0:T(8,128)}', space=vmem, size = 0x6000, scoped, tag = 'scratch operand']
  #allocation4 [shape = 'f32[20,17]{1,0:T(8,128)}', space=vmem, size = 0x3000, scoped, tag = 'scratch operand']
  %s0 = inlined_call_operand.vmem [shape: bf16[144,128], index: 0, kind: input, shape index: {}]
  %s1 = inlined_call_operand.vmem [shape: bf16[128,33], index: 1, kind: input, shape index: {}]
  %s2 = inlined_call_operand.vmem [shape: bf16[99,17], index: 2, kind: input, shape index: {}]
  %s3 = inlined_call_operand.vmem [shape: bf16[51,17], index: 3, kind: input, shape index: {}]
  %s4 = inlined_call_operand.vmem [shape: bf16[68,33], index: 4, kind: input, shape index: {}]
  %s5 = inlined_call_operand.vmem [shape: bf16[33,3], index: 5, kind: input, shape index: {}]
  %s6 = inlined_call_operand.hbm [shape: f32[2,3], index: 6, kind: output, shape index: {}]
  %s7 = sld [smem:[#allocation0]]
  $region34: #{net1_forward.1} parent=0
    _
  %s9 = ssub.s32 1, %s7
  %s10 = scalar_select 0, %s9, %s7
  $region1: #{net1_forward.1} parent=0
    #allocation5 [shape = 'u8[1024]{0}', space=vmem, size = 0x400, scoped, tag = 'output window, operand 0, single buffered']
    #allocation6 [shape = 's32[1]{0}', space=sflag, size = 0x4, scoped, tag = 'scoped memory for net1_forward.1']
    %11 = vsyncpa [#allocation6], 0
    // Predicated region
    $region2: #{net1_forward.1} parent=1 // pred_check
      _
    $region3: #{net1_forward.1} parent=1 // pred_check_branch
      %13 = sbr.rel (0) target = $region5
    $region4: #{net1_forward.1} parent=1 // pred_region
      _
    $region5: #{net1_forward.1} parent=1 // pred_fallthru
      _
    // Predicated region
    $region6: #{net1_forward.1} parent=1 // pred_check
      _
    $region7: #{net1_forward.1} parent=1 // pred_check_branch
      %15 = sbr.rel (0) target = $region9
    $region8: #{net1_forward.1} parent=1 // pred_region
      _
    $region9: #{net1_forward.1} parent=1 // pred_fallthru
      _
    // Predicated region
    $region10: #{net1_forward.1} parent=1 // pred_check
      _
    $region11: #{net1_forward.1} parent=1 // pred_check_branch
      %17 = sbr.rel (0) target = $region13
    $region12: #{net1_forward.1} parent=1 // pred_region
      _
    $region13: #{net1_forward.1} parent=1 // pred_fallthru
      _
    // Predicated region
    $region14: #{net1_forward.1} parent=1 // pred_check
      _
    $region15: #{net1_forward.1} parent=1 // pred_check_branch
      %19 = sbr.rel (0) target = $region17
    $region16: #{net1_forward.1} parent=1 // pred_region
      _
    $region17: #{net1_forward.1} parent=1 // pred_fallthru
      _
    // Predicated region
    $region18: #{net1_forward.1} parent=1 // pred_check
      _
    $region19: #{net1_forward.1} parent=1 // pred_check_branch
      %21 = sbr.rel (0) target = $region21
    $region20: #{net1_forward.1} parent=1 // pred_region
      _
    $region21: #{net1_forward.1} parent=1 // pred_fallthru
      _
    // Predicated region
    $region22: #{net1_forward.1} parent=1 // pred_check
      _
    $region23: #{net1_forward.1} parent=1 // pred_check_branch
      %23 = sbr.rel (0) target = $region25
    $region24: #{net1_forward.1} parent=1 // pred_region
      _
    $region25: #{net1_forward.1} parent=1 // pred_fallthru
      _
    %v25 = vld [vmem:[%s0] sm:$0xf]
    %v26 = vld [vmem:[%s0 + $0x4] sm:$0xf]
    %v27 = vld [vmem:[%s0 + $0x8] sm:$0xf]
    %v28 = vld [vmem:[%s0 + $0xc] sm:$0xf]
    %v29 = vld [vmem:[%s0 + $0x10] sm:$0xf]
    %v30 = vld [vmem:[%s0 + $0x14] sm:$0xf]
    %v31 = vld [vmem:[%s0 + $0x18] sm:$0xf]
    %v32 = vld [vmem:[%s0 + $0x1c] sm:$0xf]
    %v33 = vld [vmem:[%s0 + $0x20] sm:$0xf]
    %v34 = vld [vmem:[%s0 + $0x24] sm:$0xf]
    %v35 = vld [vmem:[%s0 + $0x28] sm:$0xf]
    %v36 = vld [vmem:[%s0 + $0x2c] sm:$0xf]
    %v37 = vld [vmem:[%s0 + $0x30] sm:$0xf]
    %v38 = vld [vmem:[%s0 + $0x34] sm:$0xf]
    %v39 = vld [vmem:[%s0 + $0x38] sm:$0xf]
    %v40 = vld [vmem:[%s0 + $0x3c] sm:$0xf]
    %v41 = vld [vmem:[%s0 + $0x40] sm:$0xf]
    %v42 = vld [vmem:[%s0 + $0x44] sm:$0xf]
    %v43 = vld [vmem:[%s1] sm:$0xf]
    %v44 = vld [vmem:[%s1 + $0x4] sm:$0xf]
    %v45 = vld [vmem:[%s1 + $0x8] sm:$0xf]
    %v46 = vld [vmem:[%s1 + $0xc] sm:$0xf]
    %v47 = vld [vmem:[%s1 + $0x10] sm:$0xf]
    %v48 = vld [vmem:[%s1 + $0x14] sm:$0xf]
    %v49 = vld [vmem:[%s1 + $0x18] sm:$0xf]
    %v50 = vld [vmem:[%s1 + $0x1c] sm:$0xf]
    %v51 = vld [vmem:[%s1 + $0x20] sm:$0xf]
    %v52 = vld [vmem:[%s1 + $0x24] sm:$0xf]
    %v53 = vld [vmem:[%s1 + $0x28] sm:$0xf]
    %v54 = vld [vmem:[%s1 + $0x2c] sm:$0xf]
    %v55 = vld [vmem:[%s1 + $0x30] sm:$0xf]
    %v56 = vld [vmem:[%s1 + $0x34] sm:$0xf]
    %v57 = vld [vmem:[%s1 + $0x38] sm:$0xf]
    %v58 = vld [vmem:[%s1 + $0x3c] sm:$0xf]
    %v77 = vunpack.c.l.b16 %v25
    %v78 = vunpack.c.l.b16 %v26
    %v79 = vunpack.c.l.b16 %v27
    %v80 = vunpack.c.l.b16 %v28
    %v81 = vunpack.c.l.b16 %v29
    %v82 = vunpack.c.l.b16 %v30
    %v83 = vunpack.c.l.b16 %v31
    %v84 = vunpack.c.l.b16 %v32
    %v85 = vunpack.c.l.b16 %v33
    %v86 = vunpack.c.l.b16 %v34
    %v87 = vunpack.c.l.b16 %v35
    %v88 = vunpack.c.l.b16 %v36
    %v89 = vunpack.c.l.b16 %v37
    %v90 = vunpack.c.l.b16 %v38
    %v91 = vunpack.c.l.b16 %v39
    %v92 = vunpack.c.l.b16 %v40
    %v93 = vunpack.c.l.b16 %v41
    %v94 = vunpack.c.l.b16 %v42
    %v95 = vpack.c.b16 %v78, %v77
    %v96 = vpack.c.b16 %v80, %v79
    %v97 = vpack.c.b16 %v82, %v81
    %v98 = vpack.c.b16 %v84, %v83
    %v99 = vpack.c.b16 %v86, %v85
    %v100 = vpack.c.b16 %v88, %v87
    %v101 = vpack.c.b16 %v90, %v89
    %v102 = vpack.c.b16 %v92, %v91
    %v103 = vpack.c.b16 %v94, %v93
    %v129 = vunpack.c.l.b16 %v43
    %v130 = vunpack.c.l.b16 %v44
    %v131 = vunpack.c.l.b16 %v45
    %v132 = vunpack.c.l.b16 %v46
    %v133 = vunpack.c.l.b16 %v47
    %v134 = vunpack.c.l.b16 %v48
    %v135 = vunpack.c.l.b16 %v49
    %v136 = vunpack.c.l.b16 %v50
    %v137 = vunpack.c.l.b16 %v51
    %v138 = vunpack.c.l.b16 %v52
    %v139 = vunpack.c.l.b16 %v53
    %v140 = vunpack.c.l.b16 %v54
    %v141 = vunpack.c.l.b16 %v55
    %v142 = vunpack.c.l.b16 %v56
    %v143 = vunpack.c.l.b16 %v57
    %v144 = vunpack.c.l.b16 %v58
    %v145 = vpack.c.b16 %v130, %v129
    %v146 = vpack.c.b16 %v132, %v131
    %v147 = vpack.c.b16 %v134, %v133
    %v148 = vpack.c.b16 %v136, %v135
    %v149 = vpack.c.b16 %v138, %v137
    %v150 = vpack.c.b16 %v140, %v139
    %v151 = vpack.c.b16 %v142, %v141
    %v152 = vpack.c.b16 %v144, %v143
    %161 = vmatprep.subr.bf16.mxu0 0
    %162 = vmatpush1.bf16.msra.mxu0 %v152
    %163 = vmatprep.subr.bf16.mxu0 0
    %164 = vmatpush1.bf16.msra.mxu0 %v151
    %165 = vmatprep.subr.bf16.mxu0 0
    %166 = vmatpush1.bf16.msra.mxu0 %v150
    %167 = vmatprep.subr.bf16.mxu0 0
    %168 = vmatpush1.bf16.msra.mxu0 %v149
    %169 = vmatprep.subr.bf16.mxu0 0
    %170 = vmatpush1.bf16.msra.mxu0 %v148
    %171 = vmatprep.subr.bf16.mxu0 0
    %172 = vmatpush1.bf16.msra.mxu0 %v147
    %173 = vmatprep.subr.bf16.mxu0 0
    %174 = vmatpush1.bf16.msra.mxu0 %v146
    %175 = vmatprep.subr.bf16.mxu0 0
    %176 = vmatpush1.bf16.msra.mxu0 %v145
    %177 = vmatprep.subr.bf16.mxu0 0
    %178 = vmatpush2.bf16.msra.mxu0 0
    %179 = vmatprep.subr.bf16.mxu0 0
    %180 = vmatpush2.bf16.msra.mxu0 0
    %181 = vmatprep.subr.bf16.mxu0 0
    %182 = vmatpush2.bf16.msra.mxu0 0
    %183 = vmatprep.subr.bf16.mxu0 0
    %184 = vmatpush2.bf16.msra.mxu0 0
    %185 = vmatprep.subr.bf16.mxu0 0
    %186 = vmatpush2.bf16.msra.mxu0 0
    %187 = vmatprep.subr.bf16.mxu0 0
    %188 = vmatpush2.bf16.msra.mxu0 0
    %189 = vmatprep.subr.bf16.mxu0 0
    %190 = vmatpush2.bf16.msra.mxu0 0
    %191 = vmatprep.subr.bf16.mxu0 0
    %192 = vmatpush2.bf16.msra.mxu0 0
    %193 = vmatprep.mubr.bf16.mxu0 0
    %194 = vmatmul.mubr.bf16.gmra.mxu0 %v95
    %v195 = vpop.f32.mrf.mxu0
    %v196 = vadd.f32 0.0, %v195
    %v197 = vpop.f32.mrf.mxu0
    %v198 = vpop.f32.mrf.mxu0
    %v199 = vadd.f32 0.0, %v198
    %v200 = vpop.f32.mrf.mxu0
    %201 = vmatprep.mubr.bf16.mxu0 0
    %202 = vmatmul.mubr.bf16.gmra.mxu0 %v96
    %v203 = vpop.f32.mrf.mxu0
    %v204 = vadd.f32 0.0, %v203
    %v205 = vpop.f32.mrf.mxu0
    %v206 = vpop.f32.mrf.mxu0
    %v207 = vadd.f32 0.0, %v206
    %v208 = vpop.f32.mrf.mxu0
    %209 = vmatprep.mubr.bf16.mxu0 0
    %210 = vmatmul.mubr.bf16.gmra.mxu0 %v97
    %v211 = vpop.f32.mrf.mxu0
    %v212 = vadd.f32 0.0, %v211
    %v213 = vpop.f32.mrf.mxu0
    %v214 = vpop.f32.mrf.mxu0
    %v215 = vadd.f32 0.0, %v214
    %v216 = vpop.f32.mrf.mxu0
    %217 = vmatprep.mubr.bf16.mxu0 0
    %218 = vmatmul.mubr.bf16.gmra.mxu0 %v98
    %v219 = vpop.f32.mrf.mxu0
    %v220 = vadd.f32 0.0, %v219
    %v221 = vpop.f32.mrf.mxu0
    %v222 = vpop.f32.mrf.mxu0
    %v223 = vadd.f32 0.0, %v222
    %v224 = vpop.f32.mrf.mxu0
    %225 = vmatprep.mubr.bf16.mxu0 0
    %226 = vmatmul.mubr.bf16.gmra.mxu0 %v99
    %v227 = vpop.f32.mrf.mxu0
    %v228 = vadd.f32 0.0, %v227
    %v229 = vpop.f32.mrf.mxu0
    %v230 = vpop.f32.mrf.mxu0
    %v231 = vadd.f32 0.0, %v230
    %v232 = vpop.f32.mrf.mxu0
    %233 = vmatprep.mubr.bf16.mxu0 0
    %234 = vmatmul.mubr.bf16.gmra.mxu0 %v100
    %v235 = vpop.f32.mrf.mxu0
    %v236 = vadd.f32 0.0, %v235
    %v237 = vpop.f32.mrf.mxu0
    %v238 = vpop.f32.mrf.mxu0
    %v239 = vadd.f32 0.0, %v238
    %v240 = vpop.f32.mrf.mxu0
    %241 = vmatprep.mubr.bf16.mxu0 0
    %242 = vmatmul.mubr.bf16.gmra.mxu0 %v101
    %v243 = vpop.f32.mrf.mxu0
    %v244 = vadd.f32 0.0, %v243
    %v245 = vpop.f32.mrf.mxu0
    %v246 = vpop.f32.mrf.mxu0
    %v247 = vadd.f32 0.0, %v246
    %v248 = vpop.f32.mrf.mxu0
    %249 = vmatprep.mubr.bf16.mxu0 0
    %250 = vmatmul.mubr.bf16.gmra.mxu0 %v102
    %v251 = vpop.f32.mrf.mxu0
    %v252 = vadd.f32 0.0, %v251
    %v253 = vpop.f32.mrf.mxu0
    %v254 = vpop.f32.mrf.mxu0
    %v255 = vadd.f32 0.0, %v254
    %v256 = vpop.f32.mrf.mxu0
    %257 = vmatprep.mubr.bf16.mxu0 0
    %258 = vmatmul.mubr.bf16.gmra.mxu0 %v103
    %v259 = vpop.f32.mrf.mxu0
    %v260 = vadd.f32 0.0, %v259
    %v261 = vpop.f32.mrf.mxu0
    %v262 = vpop.f32.mrf.mxu0
    %v263 = vadd.f32 0.0, %v262
    %v264 = vpop.f32.mrf.mxu0
    %265 = vdwg.mxu0
    %vm266 = vcmask 269312
    %267 = vst.msk [vmem:[#allocation2] sm:$0xff] %vm266, %v196
    %268 = vst.msk [vmem:[#allocation2 + $0x8] sm:$0xff] %vm266, %v199
    %269 = vst.msk [vmem:[#allocation2 + $0x10] sm:$0xff] %vm266, %v204
    %270 = vst.msk [vmem:[#allocation2 + $0x18] sm:$0xff] %vm266, %v207
    %271 = vst.msk [vmem:[#allocation2 + $0x20] sm:$0xff] %vm266, %v212
    %272 = vst.msk [vmem:[#allocation2 + $0x28] sm:$0xff] %vm266, %v215
    %273 = vst.msk [vmem:[#allocation2 + $0x30] sm:$0xff] %vm266, %v220
    %274 = vst.msk [vmem:[#allocation2 + $0x38] sm:$0xff] %vm266, %v223
    %275 = vst.msk [vmem:[#allocation2 + $0x40] sm:$0xff] %vm266, %v228
    %276 = vst.msk [vmem:[#allocation2 + $0x48] sm:$0xff] %vm266, %v231
    %277 = vst.msk [vmem:[#allocation2 + $0x50] sm:$0xff] %vm266, %v236
    %278 = vst.msk [vmem:[#allocation2 + $0x58] sm:$0xff] %vm266, %v239
    %279 = vst.msk [vmem:[#allocation2 + $0x60] sm:$0xff] %vm266, %v244
    %280 = vst.msk [vmem:[#allocation2 + $0x68] sm:$0xff] %vm266, %v247
    %281 = vst.msk [vmem:[#allocation2 + $0x70] sm:$0xff] %vm266, %v252
    %282 = vst.msk [vmem:[#allocation2 + $0x78] sm:$0xff] %vm266, %v255
    %283 = vst.msk [vmem:[#allocation2 + $0x80] sm:$0xff] %vm266, %v260
    %284 = vst.msk [vmem:[#allocation2 + $0x88] sm:$0xff] %vm266, %v263
    %v285 = vld [vmem:[#allocation2] ss:$3 sm:$0xff]
    %s286 = scalar_lea.vmem [#allocation2], 24
    %v287 = vld [vmem:[%s286] ss:$3 sm:$0xff]
    %s288 = scalar_lea.vmem [#allocation2], 48
    %v289 = vld [vmem:[%s288] ss:$3 sm:$0xff]
    %s290 = scalar_lea.vmem [#allocation2], 72
    %v291 = vld [vmem:[%s290] ss:$3 sm:$0xff]
    %s292 = scalar_lea.vmem [#allocation2], 96
    %v293 = vld [vmem:[%s292] ss:$3 sm:$0xff]
    %s294 = scalar_lea.vmem [#allocation2], 120
    %v295 = vld [vmem:[%s294] ss:$3 sm:$0xff]
    %s296 = scalar_lea.vmem [#allocation2], 1
    %v297 = vld [vmem:[%s296] ss:$3 sm:$0xff]
    %s298 = scalar_lea.vmem [#allocation2], 25
    %v299 = vld [vmem:[%s298] ss:$3 sm:$0xff]
    %s300 = scalar_lea.vmem [#allocation2], 49
    %v301 = vld [vmem:[%s300] ss:$3 sm:$0xff]
    %s302 = scalar_lea.vmem [#allocation2], 73
    %v303 = vld [vmem:[%s302] ss:$3 sm:$0xff]
    %s304 = scalar_lea.vmem [#allocation2], 97
    %v305 = vld [vmem:[%s304] ss:$3 sm:$0xff]
    %s306 = scalar_lea.vmem [#allocation2], 121
    %v307 = vld [vmem:[%s306] ss:$3 sm:$0xff]
    %v308 = vmax.f32 %v285, %v297
    %v309 = vmax.f32 %v287, %v299
    %v310 = vmax.f32 %v289, %v301
    %v311 = vmax.f32 %v291, %v303
    %v312 = vmax.f32 %v293, %v305
    %v313 = vmax.f32 %v295, %v307
    %s314 = scalar_lea.vmem [#allocation2], 2
    %v315 = vld [vmem:[%s314] ss:$3 sm:$0xff]
    %s316 = scalar_lea.vmem [#allocation2], 26
    %v317 = vld [vmem:[%s316] ss:$3 sm:$0xff]
    %s318 = scalar_lea.vmem [#allocation2], 50
    %v319 = vld [vmem:[%s318] ss:$3 sm:$0xff]
    %s320 = scalar_lea.vmem [#allocation2], 74
    %v321 = vld [vmem:[%s320] ss:$3 sm:$0xff]
    %s322 = scalar_lea.vmem [#allocation2], 98
    %v323 = vld [vmem:[%s322] ss:$3 sm:$0xff]
    %s324 = scalar_lea.vmem [#allocation2], 122
    %v325 = vld [vmem:[%s324] ss:$3 sm:$0xff]
    %v326 = vmax.f32 %v315, 0.0
    %v327 = vmax.f32 %v317, 0.0
    %v328 = vmax.f32 %v319, 0.0
    %v329 = vmax.f32 %v321, 0.0
    %v330 = vmax.f32 %v323, 0.0
    %v331 = vmax.f32 %v325, 0.0
    %v332 = vmax.f32 %v308, %v326
    %v333 = vmax.f32 %v309, %v327
    %v334 = vmax.f32 %v310, %v328
    %v335 = vmax.f32 %v311, %v329
    %v336 = vmax.f32 %v312, %v330
    %v337 = vmax.f32 %v313, %v331
    %vm344 = vcmask 1046528
    %v345 = vrot.slane %v332, 1
    %v346 = vrot.slane %v333, 1
    %v347 = vsel %vm344, %v345, %v346
    %v348 = vrot.slane %v334, 1
    %v349 = vsel %vm344, %v346, %v348
    %v350 = vrot.slane %v335, 1
    %v351 = vsel %vm344, %v348, %v350
    %v352 = vrot.slane %v336, 1
    %v353 = vsel %vm344, %v350, %v352
    %v354 = vrot.slane %v337, 1
    %v355 = vsel %vm344, %v352, %v354
    %356 = vrot.lane.b32.xlu0 %v347, 33
    %v357 = vpop.permute.xlu0 %356
    %358 = vrot.lane.b32.xlu0 %v349, 33
    %v359 = vpop.permute.xlu0 %358
    %360 = vrot.lane.b32.xlu0 %v351, 33
    %v361 = vpop.permute.xlu0 %360
    %362 = vrot.lane.b32.xlu0 %v353, 33
    %v363 = vpop.permute.xlu0 %362
    %364 = vrot.lane.b32.xlu0 %v355, 33
    %v365 = vpop.permute.xlu0 %364
    %366 = vrot.lane.b32.xlu0 %v354, 33
    %v367 = vpop.permute.xlu0 %366
    %vm374 = vcmask 1045504
    %v375 = vrot.slane %v332, 2
    %v376 = vrot.slane %v333, 2
    %v377 = vsel %vm374, %v375, %v376
    %v378 = vrot.slane %v334, 2
    %v379 = vsel %vm374, %v376, %v378
    %v380 = vrot.slane %v335, 2
    %v381 = vsel %vm374, %v378, %v380
    %v382 = vrot.slane %v336, 2
    %v383 = vsel %vm374, %v380, %v382
    %v384 = vrot.slane %v337, 2
    %v385 = vsel %vm374, %v382, %v384
    %386 = vrot.lane.b32.xlu0 %v377, 66
    %v387 = vpop.permute.xlu0 %386
    %388 = vrot.lane.b32.xlu0 %v379, 66
    %v389 = vpop.permute.xlu0 %388
    %390 = vrot.lane.b32.xlu0 %v381, 66
    %v391 = vpop.permute.xlu0 %390
    %392 = vrot.lane.b32.xlu0 %v383, 66
    %v393 = vpop.permute.xlu0 %392
    %394 = vrot.lane.b32.xlu0 %v385, 66
    %v395 = vpop.permute.xlu0 %394
    %396 = vrot.lane.b32.xlu0 %v384, 66
    %v397 = vpop.permute.xlu0 %396
    %v404 = vsel %vm266, %v332, %v357
    %v405 = vsel %vm266, %v333, %v359
    %v406 = vsel %vm266, %v334, %v361
    %v407 = vsel %vm266, %v335, %v363
    %v408 = vsel %vm266, %v336, %v365
    %v409 = vsel %vm266, %v337, %v367
    %vm410 = vcmask 539648
    %v411 = vsel %vm410, %v404, %v387
    %v412 = vsel %vm410, %v405, %v389
    %v413 = vsel %vm410, %v406, %v391
    %v414 = vsel %vm410, %v407, %v393
    %v415 = vsel %vm410, %v408, %v395
    %v416 = vsel %vm410, %v409, %v397
    %v417 = vpack.c.bf16 %v412, %v411
    %v418 = vpack.c.bf16 %v414, %v413
    %v419 = vpack.c.bf16 %v416, %v415
    %v420 = vld [vmem:[%s2] sm:$0xf]
    %v421 = vld [vmem:[%s2 + $0x4] sm:$0xf]
    %v422 = vld [vmem:[%s2 + $0x8] sm:$0xf]
    %v423 = vld [vmem:[%s2 + $0xc] sm:$0xf]
    %v424 = vld [vmem:[%s2 + $0x10] sm:$0xf]
    %v425 = vld [vmem:[%s2 + $0x14] sm:$0xf]
    %v426 = vld [vmem:[%s2 + $0x18] sm:$0xf]
    %v427 = vld [vmem:[%s2 + $0x1c] sm:$0xf]
    %v428 = vld [vmem:[%s2 + $0x20] sm:$0xf]
    %v429 = vld [vmem:[%s2 + $0x24] sm:$0xf]
    %v430 = vld [vmem:[%s2 + $0x28] sm:$0xf]
    %v431 = vld [vmem:[%s2 + $0x2c] sm:$0xf]
    %v432 = vld [vmem:[%s2 + $0x30] sm:$0x3]
    %v446 = vunpack.c.l.b16 %v420
    %v447 = vunpack.c.l.b16 %v421
    %v448 = vunpack.c.l.b16 %v422
    %v449 = vunpack.c.l.b16 %v423
    %v450 = vunpack.c.l.b16 %v424
    %v451 = vunpack.c.l.b16 %v425
    %v452 = vunpack.c.l.b16 %v426
    %v453 = vunpack.c.l.b16 %v427
    %v454 = vunpack.c.l.b16 %v428
    %v455 = vunpack.c.l.b16 %v429
    %v456 = vunpack.c.l.b16 %v430
    %v457 = vunpack.c.l.b16 %v431
    %v458 = vunpack.c.l.b16 %v432
    %v459 = vpack.c.b16 %v447, %v446
    %v460 = vpack.c.b16 %v449, %v448
    %v461 = vpack.c.b16 %v451, %v450
    %v462 = vpack.c.b16 %v453, %v452
    %v463 = vpack.c.b16 %v455, %v454
    %v464 = vpack.c.b16 %v457, %v456
    %v465 = vpack.c.b16 %v458, %v458
    %vm472 = vcmask 809984
    %v474 = vsel %vm472, %v417, 0
    %v477 = vsel %vm472, %v418, 0
    %v480 = vsel %vm472, %v419, 0
    %vm482 = vcmask 1040384
    %vm483 = vcmask 1041408
    %v484 = vsel %vm482, 4294967295, 65535
    %v485 = vsel %vm483, %v484, 0
    %v487 = vand.u32 %v465, %v485
    %489 = vmatprep.subr.bf16.mxu0 0
    %490 = vmatpush1.bf16.msra.mxu0 0
    %491 = vmatprep.subr.bf16.mxu0 0
    %492 = vmatpush1.bf16.msra.mxu0 %v487
    %493 = vmatprep.subr.bf16.mxu0 0
    %494 = vmatpush1.bf16.msra.mxu0 %v464
    %495 = vmatprep.subr.bf16.mxu0 0
    %496 = vmatpush1.bf16.msra.mxu0 %v463
    %497 = vmatprep.subr.bf16.mxu0 0
    %498 = vmatpush1.bf16.msra.mxu0 %v462
    %499 = vmatprep.subr.bf16.mxu0 0
    %500 = vmatpush1.bf16.msra.mxu0 %v461
    %501 = vmatprep.subr.bf16.mxu0 0
    %502 = vmatpush1.bf16.msra.mxu0 %v460
    %503 = vmatprep.subr.bf16.mxu0 0
    %504 = vmatpush1.bf16.msra.mxu0 %v459
    %505 = vmatprep.subr.bf16.mxu0 0
    %506 = vmatpush2.bf16.msra.mxu0 0
    %507 = vmatprep.subr.bf16.mxu0 0
    %508 = vmatpush2.bf16.msra.mxu0 0
    %509 = vmatprep.subr.bf16.mxu0 0
    %510 = vmatpush2.bf16.msra.mxu0 0
    %511 = vmatprep.subr.bf16.mxu0 0
    %512 = vmatpush2.bf16.msra.mxu0 0
    %513 = vmatprep.subr.bf16.mxu0 0
    %514 = vmatpush2.bf16.msra.mxu0 0
    %515 = vmatprep.subr.bf16.mxu0 0
    %516 = vmatpush2.bf16.msra.mxu0 0
    %517 = vmatprep.subr.bf16.mxu0 0
    %518 = vmatpush2.bf16.msra.mxu0 0
    %519 = vmatprep.subr.bf16.mxu0 0
    %520 = vmatpush2.bf16.msra.mxu0 0
    %521 = vmatprep.mubr.bf16.mxu0 0
    %522 = vmatmul.mubr.bf16.gmra.mxu0 %v474
    %v523 = vpop.f32.mrf.mxu0
    %v524 = vadd.f32 0.0, %v523
    %v525 = vpop.f32.mrf.mxu0
    %v526 = vpop.f32.mrf.mxu0
    %v527 = vadd.f32 0.0, %v526
    %v528 = vpop.f32.mrf.mxu0
    %529 = vmatprep.mubr.bf16.mxu0 0
    %530 = vmatmul.mubr.bf16.gmra.mxu0 %v477
    %v531 = vpop.f32.mrf.mxu0
    %v532 = vadd.f32 0.0, %v531
    %v533 = vpop.f32.mrf.mxu0
    %v534 = vpop.f32.mrf.mxu0
    %v535 = vadd.f32 0.0, %v534
    %v536 = vpop.f32.mrf.mxu0
    %537 = vmatprep.mubr.bf16.mxu0 0
    %538 = vmatmul.mubr.bf16.gmra.mxu0 %v480
    %v539 = vpop.f32.mrf.mxu0
    %v540 = vadd.f32 0.0, %v539
    %v541 = vpop.f32.mrf.mxu0
    %v542 = vpop.f32.mrf.mxu0
    %v543 = vadd.f32 0.0, %v542
    %v544 = vpop.f32.mrf.mxu0
    %545 = vdwg.mxu0
    %vm546 = vcmask 138240
    %547 = vst.msk [vmem:[#allocation3] sm:$0xff] %vm546, %v524
    %548 = vst.msk [vmem:[#allocation3 + $0x8] sm:$0xff] %vm546, %v527
    %549 = vst.msk [vmem:[#allocation3 + $0x10] sm:$0xff] %vm546, %v532
    %550 = vst.msk [vmem:[#allocation3 + $0x18] sm:$0xff] %vm546, %v535
    %551 = vst.msk [vmem:[#allocation3 + $0x20] sm:$0xff] %vm546, %v540
    %vm552 = vcmask 134144
    %553 = vst.msk [vmem:[#allocation3 + $0x28] sm:$0xf] %vm552, %v543
    %v554 = vld [vmem:[#allocation3] ss:$2 sm:$0xff]
    %s555 = scalar_lea.vmem [#allocation3], 16
    %v556 = vld [vmem:[%s555] ss:$2 sm:$0xff]
    %s557 = scalar_lea.vmem [#allocation3], 32
    %v558 = vld [vmem:[%s557] ss:$2 sm:$0x3f]
    %s559 = scalar_lea.vmem [#allocation3], 1
    %v560 = vld [vmem:[%s559] ss:$2 sm:$0xff]
    %s561 = scalar_lea.vmem [#allocation3], 17
    %v562 = vld [vmem:[%s561] ss:$2 sm:$0xff]
    %s563 = scalar_lea.vmem [#allocation3], 33
    %v564 = vld [vmem:[%s563] ss:$2 sm:$0x3f]
    %v565 = vmax.f32 %v554, %v560
    %v566 = vmax.f32 %v556, %v562
    %v567 = vmax.f32 %v558, %v564
    %v568 = vmax.f32 %v565, 0.0
    %v569 = vmax.f32 %v566, 0.0
    %v570 = vmax.f32 %v567, 0.0
    %v574 = vrot.slane %v568, 1
    %v575 = vrot.slane %v569, 1
    %v576 = vsel %vm344, %v574, %v575
    %v577 = vrot.slane %v570, 1
    %v578 = vsel %vm344, %v575, %v577
    %579 = vrot.lane.b32.xlu0 %v576, 17
    %v580 = vpop.permute.xlu0 %579
    %581 = vrot.lane.b32.xlu0 %v578, 17
    %v582 = vpop.permute.xlu0 %581
    %583 = vrot.lane.b32.xlu0 %v577, 17
    %v584 = vpop.permute.xlu0 %583
    %v588 = vrot.slane %v568, 2
    %v589 = vrot.slane %v569, 2
    %v590 = vsel %vm374, %v588, %v589
    %v591 = vrot.slane %v570, 2
    %v592 = vsel %vm374, %v589, %v591
    %593 = vrot.lane.b32.xlu0 %v590, 34
    %v594 = vpop.permute.xlu0 %593
    %595 = vrot.lane.b32.xlu0 %v592, 34
    %v596 = vpop.permute.xlu0 %595
    %597 = vrot.lane.b32.xlu0 %v591, 34
    %v598 = vpop.permute.xlu0 %597
    %v602 = vsel %vm546, %v568, %v580
    %v603 = vsel %vm546, %v569, %v582
    %v604 = vsel %vm546, %v570, %v584
    %vm605 = vcmask 277504
    %v606 = vsel %vm605, %v602, %v594
    %v607 = vsel %vm605, %v603, %v596
    %v608 = vsel %vm605, %v604, %v598
    %v609 = vpack.c.bf16 %v607, %v606
    %v610 = vpack.c.bf16 %v608, %v608
    %v611 = vld [vmem:[%s3] sm:$0xf]
    %v612 = vld [vmem:[%s3 + $0x4] sm:$0xf]
    %v613 = vld [vmem:[%s3 + $0x8] sm:$0xf]
    %v614 = vld [vmem:[%s3 + $0xc] sm:$0xf]
    %v615 = vld [vmem:[%s3 + $0x10] sm:$0xf]
    %v616 = vld [vmem:[%s3 + $0x14] sm:$0xf]
    %v617 = vld [vmem:[%s3 + $0x18] sm:$0x3]
    %v625 = vunpack.c.l.b16 %v611
    %v626 = vunpack.c.l.b16 %v612
    %v627 = vunpack.c.l.b16 %v613
    %v628 = vunpack.c.l.b16 %v614
    %v629 = vunpack.c.l.b16 %v615
    %v630 = vunpack.c.l.b16 %v616
    %v631 = vunpack.c.l.b16 %v617
    %v632 = vpack.c.b16 %v626, %v625
    %v633 = vpack.c.b16 %v628, %v627
    %v634 = vpack.c.b16 %v630, %v629
    %v635 = vpack.c.b16 %v631, %v631
    %vm639 = vcmask 416768
    %v641 = vsel %vm639, %v609, 0
    %v644 = vsel %vm639, %v610, 0
    %v647 = vand.u32 %v635, %v485
    %649 = vmatprep.subr.bf16.mxu0 0
    %650 = vmatpush1.bf16.msra.mxu0 0
    %651 = vmatprep.subr.bf16.mxu0 0
    %652 = vmatpush1.bf16.msra.mxu0 0
    %653 = vmatprep.subr.bf16.mxu0 0
    %654 = vmatpush1.bf16.msra.mxu0 0
    %655 = vmatprep.subr.bf16.mxu0 0
    %656 = vmatpush1.bf16.msra.mxu0 0
    %657 = vmatprep.subr.bf16.mxu0 0
    %658 = vmatpush1.bf16.msra.mxu0 %v647
    %659 = vmatprep.subr.bf16.mxu0 0
    %660 = vmatpush1.bf16.msra.mxu0 %v634
    %661 = vmatprep.subr.bf16.mxu0 0
    %662 = vmatpush1.bf16.msra.mxu0 %v633
    %663 = vmatprep.subr.bf16.mxu0 0
    %664 = vmatpush1.bf16.msra.mxu0 %v632
    %665 = vmatprep.subr.bf16.mxu0 0
    %666 = vmatpush2.bf16.msra.mxu0 0
    %667 = vmatprep.subr.bf16.mxu0 0
    %668 = vmatpush2.bf16.msra.mxu0 0
    %669 = vmatprep.subr.bf16.mxu0 0
    %670 = vmatpush2.bf16.msra.mxu0 0
    %671 = vmatprep.subr.bf16.mxu0 0
    %672 = vmatpush2.bf16.msra.mxu0 0
    %673 = vmatprep.subr.bf16.mxu0 0
    %674 = vmatpush2.bf16.msra.mxu0 0
    %675 = vmatprep.subr.bf16.mxu0 0
    %676 = vmatpush2.bf16.msra.mxu0 0
    %677 = vmatprep.subr.bf16.mxu0 0
    %678 = vmatpush2.bf16.msra.mxu0 0
    %679 = vmatprep.subr.bf16.mxu0 0
    %680 = vmatpush2.bf16.msra.mxu0 0
    %681 = vmatprep.mubr.bf16.mxu0 0
    %682 = vmatmul.mubr.bf16.gmra.mxu0 %v641
    %v683 = vpop.f32.mrf.mxu0
    %v684 = vadd.f32 0.0, %v683
    %v685 = vpop.f32.mrf.mxu0
    %v686 = vpop.f32.mrf.mxu0
    %v687 = vadd.f32 0.0, %v686
    %v688 = vpop.f32.mrf.mxu0
    %689 = vmatprep.mubr.bf16.mxu0 0
    %690 = vmatmul.mubr.bf16.gmra.mxu0 %v644
    %v691 = vpop.f32.mrf.mxu0
    %v692 = vadd.f32 0.0, %v691
    %v693 = vpop.f32.mrf.mxu0
    %v694 = vpop.f32.mrf.mxu0
    %v695 = vpop.f32.mrf.mxu0
    %696 = vdwg.mxu0
    %697 = vst.msk [vmem:[#allocation4] sm:$0xff] %vm546, %v684
    %698 = vst.msk [vmem:[#allocation4 + $0x8] sm:$0xff] %vm546, %v687
    %699 = vst.msk [vmem:[#allocation4 + $0x10] sm:$0xf] %vm552, %v692
    %v700 = vld [vmem:[#allocation4] ss:$2 sm:$0xff]
    %s701 = scalar_lea.vmem [#allocation4], 16
    %v702 = vld [vmem:[%s701] ss:$2 sm:$0x3]
    %s703 = scalar_lea.vmem [#allocation4], 1
    %v704 = vld [vmem:[%s703] ss:$2 sm:$0xff]
    %s705 = scalar_lea.vmem [#allocation4], 17
    %v706 = vld [vmem:[%s705] ss:$2 sm:$0x3]
    %v707 = vmax.f32 %v700, %v704
    %v708 = vmax.f32 %v702, %v706
    %v709 = vmax.f32 %v707, 0.0
    %v710 = vmax.f32 %v708, 0.0
    %v712 = vrot.slane %v709, 1
    %713 = vrot.lane.b32.xlu0 %v712, 17
    %v714 = vpop.permute.xlu0 %713
    %v717 = vrot.slane %v709, 2
    %v718 = vrot.slane %v710, 2
    %v719 = vsel %vm374, %v717, %v718
    %720 = vrot.lane.b32.xlu0 %v719, 34
    %v721 = vpop.permute.xlu0 %720
    %vm723 = vcmask 1044480
    %v724 = vrot.slane %v709, 3
    %v725 = vrot.slane %v710, 3
    %v726 = vsel %vm723, %v724, %v725
    %727 = vrot.lane.b32.xlu0 %v726, 51
    %v728 = vpop.permute.xlu0 %727
    %v730 = vsel %vm546, %v709, %v714
    %v731 = vsel %vm605, %v730, %v721
    %v732 = vsel %vm639, %v731, %v728
    %v733 = vpack.c.bf16 %v732, %v732
    %v734 = vld [vmem:[%s4] sm:$0xf]
    %v735 = vld [vmem:[%s4 + $0x4] sm:$0xf]
    %v736 = vld [vmem:[%s4 + $0x8] sm:$0xf]
    %v737 = vld [vmem:[%s4 + $0xc] sm:$0xf]
    %v738 = vld [vmem:[%s4 + $0x10] sm:$0xf]
    %v739 = vld [vmem:[%s4 + $0x14] sm:$0xf]
    %v740 = vld [vmem:[%s4 + $0x18] sm:$0xf]
    %v741 = vld [vmem:[%s4 + $0x1c] sm:$0xf]
    %v742 = vld [vmem:[%s4 + $0x20] sm:$0x3]
    %v752 = vunpack.c.l.b16 %v734
    %v753 = vunpack.c.l.b16 %v735
    %v754 = vunpack.c.l.b16 %v736
    %v755 = vunpack.c.l.b16 %v737
    %v756 = vunpack.c.l.b16 %v738
    %v757 = vunpack.c.l.b16 %v739
    %v758 = vunpack.c.l.b16 %v740
    %v759 = vunpack.c.l.b16 %v741
    %v760 = vunpack.c.l.b16 %v742
    %v761 = vpack.c.b16 %v753, %v752
    %v762 = vpack.c.b16 %v755, %v754
    %v763 = vpack.c.b16 %v757, %v756
    %v764 = vpack.c.b16 %v759, %v758
    %v765 = vpack.c.b16 %v760, %v760
    %vm770 = vcmask 556032
    %v772 = vsel %vm770, %v733, 0
    %v775 = vsel %vm483, %v765, 0
    %777 = vmatprep.subr.bf16.mxu0 0
    %778 = vmatpush1.bf16.msra.mxu0 0
    %779 = vmatprep.subr.bf16.mxu0 0
    %780 = vmatpush1.bf16.msra.mxu0 0
    %781 = vmatprep.subr.bf16.mxu0 0
    %782 = vmatpush1.bf16.msra.mxu0 0
    %783 = vmatprep.subr.bf16.mxu0 0
    %784 = vmatpush1.bf16.msra.mxu0 %v775
    %785 = vmatprep.subr.bf16.mxu0 0
    %786 = vmatpush1.bf16.msra.mxu0 %v764
    %787 = vmatprep.subr.bf16.mxu0 0
    %788 = vmatpush1.bf16.msra.mxu0 %v763
    %789 = vmatprep.subr.bf16.mxu0 0
    %790 = vmatpush1.bf16.msra.mxu0 %v762
    %791 = vmatprep.subr.bf16.mxu0 0
    %792 = vmatpush1.bf16.msra.mxu0 %v761
    %793 = vmatprep.subr.bf16.mxu0 0
    %794 = vmatpush2.bf16.msra.mxu0 0
    %795 = vmatprep.subr.bf16.mxu0 0
    %796 = vmatpush2.bf16.msra.mxu0 0
    %797 = vmatprep.subr.bf16.mxu0 0
    %798 = vmatpush2.bf16.msra.mxu0 0
    %799 = vmatprep.subr.bf16.mxu0 0
    %800 = vmatpush2.bf16.msra.mxu0 0
    %801 = vmatprep.subr.bf16.mxu0 0
    %802 = vmatpush2.bf16.msra.mxu0 0
    %803 = vmatprep.subr.bf16.mxu0 0
    %804 = vmatpush2.bf16.msra.mxu0 0
    %805 = vmatprep.subr.bf16.mxu0 0
    %806 = vmatpush2.bf16.msra.mxu0 0
    %807 = vmatprep.subr.bf16.mxu0 0
    %808 = vmatpush2.bf16.msra.mxu0 0
    %809 = vmatprep.mubr.bf16.mxu0 0
    %810 = vmatmul.mubr.bf16.gmra.mxu0 %v772
    %v811 = vpop.f32.mrf.mxu0
    %v812 = vadd.f32 0.0, %v811
    %v813 = vpop.f32.mrf.mxu0
    %v814 = vpop.f32.mrf.mxu0
    %v815 = vpop.f32.mrf.mxu0
    %816 = vdwg.mxu0
    %v817 = vmax.f32 %v812, 0.0
    %v818 = vpack.c.bf16 %v817, %v817
    %v819 = vld [vmem:[%s5] sm:$0xf]
    %v820 = vld [vmem:[%s5 + $0x4] sm:$0xf]
    %v821 = vld [vmem:[%s5 + $0x8] sm:$0xf]
    %v822 = vld [vmem:[%s5 + $0xc] sm:$0xf]
    %v823 = vld [vmem:[%s5 + $0x10] sm:$0x1]
    %v829 = vunpack.c.l.b16 %v819
    %v830 = vunpack.c.l.b16 %v820
    %v831 = vunpack.c.l.b16 %v821
    %v832 = vunpack.c.l.b16 %v822
    %v833 = vunpack.c.l.b16 %v823
    %v834 = vpack.c.b16 %v830, %v829
    %v835 = vpack.c.b16 %v832, %v831
    %v836 = vpack.c.b16 %v833, %v833
    %v840 = vsel %vm266, %v818, 0
    %v842 = vsel 0, 4294967295, 65535
    %v843 = vsel %vm482, %v842, 0
    %v845 = vand.u32 %v836, %v843
    %847 = vmatprep.subr.bf16.mxu0 0
    %848 = vmatpush1.bf16.msra.mxu0 0
    %849 = vmatprep.subr.bf16.mxu0 0
    %850 = vmatpush1.bf16.msra.mxu0 0
    %851 = vmatprep.subr.bf16.mxu0 0
    %852 = vmatpush1.bf16.msra.mxu0 0
    %853 = vmatprep.subr.bf16.mxu0 0
    %854 = vmatpush1.bf16.msra.mxu0 0
    %855 = vmatprep.subr.bf16.mxu0 0
    %856 = vmatpush1.bf16.msra.mxu0 0
    %857 = vmatprep.subr.bf16.mxu0 0
    %858 = vmatpush1.bf16.msra.mxu0 %v845
    %859 = vmatprep.subr.bf16.mxu0 0
    %860 = vmatpush1.bf16.msra.mxu0 %v835
    %861 = vmatprep.subr.bf16.mxu0 0
    %862 = vmatpush1.bf16.msra.mxu0 %v834
    %863 = vmatprep.subr.bf16.mxu0 0
    %864 = vmatpush2.bf16.msra.mxu0 0
    %865 = vmatprep.subr.bf16.mxu0 0
    %866 = vmatpush2.bf16.msra.mxu0 0
    %867 = vmatprep.subr.bf16.mxu0 0
    %868 = vmatpush2.bf16.msra.mxu0 0
    %869 = vmatprep.subr.bf16.mxu0 0
    %870 = vmatpush2.bf16.msra.mxu0 0
    %871 = vmatprep.subr.bf16.mxu0 0
    %872 = vmatpush2.bf16.msra.mxu0 0
    %873 = vmatprep.subr.bf16.mxu0 0
    %874 = vmatpush2.bf16.msra.mxu0 0
    %875 = vmatprep.subr.bf16.mxu0 0
    %876 = vmatpush2.bf16.msra.mxu0 0
    %877 = vmatprep.subr.bf16.mxu0 0
    %878 = vmatpush2.bf16.msra.mxu0 0
    %879 = vmatprep.mubr.bf16.mxu0 0
    %880 = vmatmul.mubr.bf16.gmra.mxu0 %v840
    %v881 = vpop.f32.mrf.mxu0
    %v882 = vadd.f32 0.0, %v881
    %v883 = vpop.f32.mrf.mxu0
    %v884 = vpop.f32.mrf.mxu0
    %v885 = vpop.f32.mrf.mxu0
    %886 = vdwg.mxu0
    %v888 = vrot.slane %v882, 5
    %v890 = vsel %vm482, %v882, %v888
    %vm891 = vcmask 17408
    %892 = vst.msk [vmem:[#allocation5] sm:$0x3] %vm891, %v890
    // Predicated region
    $region26: #{net1_forward.1} parent=1 // pred_check
      _
    $region27: #{net1_forward.1} parent=1 // pred_check_branch
      %894 = sbr.rel (0) target = $region29
    $region28: #{net1_forward.1} parent=1 // pred_region
      %s896 = ssub.s32 32, 32
      %897 = vsyncadd [#allocation6], %s896
      %s899 = sshll.u32 [#allocation5], 4
      %s900 = int_to_ptr.vmem [resolvable:$true] %s899
      %902 = dma.vmem_to_hbm [thread:$0]  %s900, 32, %s6, [#allocation6]
    $region29: #{net1_forward.1} parent=1 // pred_fallthru
      _
    // Predicated region
    $region30: #{net1_forward.1} parent=1 // pred_check
      _
    $region31: #{net1_forward.1} parent=1 // pred_check_branch
      %904 = sbr.rel (0) target = $region33
    $region32: #{net1_forward.1} parent=1 // pred_region
      %905 = dma.done [#allocation6], 32
    $region33: #{net1_forward.1} parent=1 // pred_fallthru
      _
    %906 = vsyncpa [#allocation6], 1

</llo_original>
